<compile_context>
chip_gen: v6e
topology: v6e:2x2x1
jax: 0.10.0
libtpu: 0.0.40
codegen_flags: <defaults>
</compile_context>

<pallas_src>
import functools

import jax
import jax.numpy as jnp
from jax.experimental import pallas as pl
from jax.experimental.pallas import tpu as pltpu


def _round_up(v, m):
    return (v + m - 1) // m * m


def _vmem_caps():
    """(tile-sizing budget, vmem_limit_bytes) derived from the actual chip."""
    cap = 128 * 1024 * 1024
    try:
        cap = int(getattr(pltpu.get_tpu_info(), "vmem_capacity_bytes", cap))
    except Exception:
        pass
    budget = min(cap // 2, 64 * 1024 * 1024)      # what tiles are sized against
    limit = min(cap * 3 // 4, 96 * 1024 * 1024)   # handed to Mosaic
    return budget, limit


# ---------------------------------------------------------------------------
# Pass 1a: online per-graph max / sum-of-exp.  Resident [G, 1] output accumulators.
# ---------------------------------------------------------------------------
def _segment_stats_kernel(b_ref, c_ref, m_ref, l_ref):
    k = pl.program_id(0)

    @pl.when(k == 0)
    def _():
        m_ref[...] = jnp.full_like(m_ref, -1e30)
        l_ref[...] = jnp.zeros_like(l_ref)

    b = b_ref[...]                                    # [1, tn1] int32
    c = c_ref[...]                                    # [1, tn1] f32
    G = m_ref.shape[0]
    gid = jax.lax.broadcasted_iota(jnp.int32, (G, b.shape[1]), 0)
    member = b == gid                                 # [G, tn1]
    neg = jnp.float32(-1e30)

    tile_max = jnp.max(jnp.where(member, c, neg), axis=1, keepdims=True)  # [G,1]
    m_old = m_ref[...]
    m_new = jnp.maximum(m_old, tile_max)
    # exp only where member; non-members see exp(-1e30) == 0 -> never NaN/Inf
    p = jnp.exp(jnp.where(member, c - m_new, neg))                         # [G, tn1]
    alpha = jnp.exp(m_old - m_new)                                         # [G, 1]
    l_ref[...] = l_ref[...] * alpha + jnp.sum(p, axis=1, keepdims=True)
    m_ref[...] = m_new


# ---------------------------------------------------------------------------
# Pass 1b: per-node scores  score_i = exp(c_i - m[b_i]) * (1/l)[b_i]  (lane-dense row).
# ---------------------------------------------------------------------------
def _segment_scores_kernel(b_ref, c_ref, m_ref, linv_ref, s_ref):
    b = b_ref[...]                                    # [1, tn1] int32
    c = c_ref[...]                                    # [1, tn1] f32
    G = m_ref.shape[0]
    gid = jax.lax.broadcasted_iota(jnp.int32, (G, b.shape[1]), 0)
    member = b == gid                                 # [G, tn1]
    zero = jnp.float32(0.0)
    # exact per-node gather of graph stats (single non-zero per column)
    node_m = jnp.sum(jnp.where(member, m_ref[...], zero), axis=0, keepdims=True)
    node_li = jnp.sum(jnp.where(member, linv_ref[...], zero), axis=0, keepdims=True)
    # padded nodes (batch == -1) get node_m = node_li = 0 -> score 0, never NaN
    s_ref[...] = jnp.exp(c - node_m) * node_li


# ---------------------------------------------------------------------------
# Pass 2: stream x tiles, accumulate acc += (onehot * (score + 1)) @ x  (f32 scratch).
# Grid = (F tiles ["parallel"], N tiles ["arbitrary", innermost]).
# ---------------------------------------------------------------------------
def _attention_pool_kernel(b_ref, s_ref, x_ref, o_ref, acc_ref, *, n_rows, ragged):
    k = pl.program_id(1)

    @pl.when(k == 0)
    def _():
        acc_ref[...] = jnp.zeros_like(acc_ref)

    b = b_ref[pl.ds(k, 1), :]                         # [1, tn] int32 (resident rows)
    s = s_ref[pl.ds(k, 1), :]                         # [1, tn] f32   (resident rows)
    x = x_ref[...]                                    # [tn, tf] native dtype
    tn = x.shape[0]
    if ragged:
        # zero out-of-range rows of the (partial) last x tile; batch/scores are
        # already padded (batch == -1 -> weight 0), so every product stays finite.
        row = jax.lax.broadcasted_iota(jnp.int32, (tn, 1), 0) + k * tn
        x = jnp.where(row < n_rows, x, jnp.zeros((), x.dtype))

    G = acc_ref.shape[0]
    gid = jax.lax.broadcasted_iota(jnp.int32, (G, tn), 0)
    # fused one-hot membership * (score + 1); padded nodes -> 0
    w = jnp.where(b == gid, s + jnp.float32(1.0), jnp.float32(0.0))       # [G, tn]
    # w cast to x.dtype for the MXU (bf16 when x is bf16); accumulation stays f32.
    acc_ref[...] += jnp.dot(w.astype(x.dtype), x,
                            preferred_element_type=jnp.float32)

    @pl.when(k == pl.num_programs(1) - 1)
    def _():
        o_ref[...] = acc_ref[...].astype(o_ref.dtype)


# ---------------------------------------------------------------------------
# Tile selection (generation-aware, dtype-aware).
# ---------------------------------------------------------------------------
def _choose_tiles(N, F, G, x_itemsize, block_n, block_f, budget):
    # feature tile: multiple of 128 dividing F (else full F -> no partial F blocks)
    if block_f is not None:
        tf = int(block_f)
        if F % tf != 0:
            tf = F
    elif F % 128 == 0:
        tf = min(512, F)
        while F % tf:
            tf -= 128
        # prefer >= 2 lane-dense F tiles so the "parallel" axis can use both v7x TCs
        if F // tf == 1 and F >= 256 and (F // 2) % 128 == 0:
            tf = F // 2
    else:
        tf = F  # TODO(synk): pad F to a multiple of 128 upstream for lane-dense stores
    if tf != F and tf % 128 != 0:
        tf = F
    f_tiles = F // tf

    # node tile: as big as the VMEM budget allows (double-buffered x tile)
    row_bytes = tf * x_itemsize
    reserve = 3 * G * tf * 4 + 8 * _round_up(N, 1024) + (1 << 20)
    avail = max(budget - reserve, 2 * 256 * row_bytes)
    tn_cap = max(256, avail // (2 * row_bytes))
    tn = int(block_n) if block_n is not None else min(2048, int(tn_cap))
    tn = max(8, tn // 8 * 8)
    full = _round_up(N, 8)
    if tn >= full:
        tn = full                           # single tile covers all rows
    else:
        tn = max(128, tn // 128 * 128)      # pass-1 blocks need 128-lane multiples
    n_tiles = -(-N // tn)
    return tf, f_tiles, tn, n_tiles


def global_hard_attention(x, interface_count, batch, size=None,
                          *, block_n=None, block_f=None):
    """x: [N, F] (f32 or bf16), interface_count: [N], batch: [N] int32 (sorted).

    Returns [size, F] in x.dtype: out[g] = sum_{i: batch[i]==g} (softmax_g(c)[i]+1)*x[i].
    """
    N, F = x.shape
    if size is None:
        # matches the torch module's default; requires a concrete (non-traced) batch
        size = int(batch[-1]) + 1
    G = int(size)

    budget, vmem_limit = _vmem_caps()
    itemsize = jnp.dtype(x.dtype).itemsize
    tf, f_tiles, tn, n_tiles = _choose_tiles(N, F, G, itemsize, block_n, block_f, budget)
    NP = n_tiles * tn
    ragged = NP != N

    # pass-1 node tile: a 128-multiple dividing NP, shrunk if [G, tn1] temps get big
    if n_tiles == 1:
        tn1 = NP
    else:
        tn1 = 128
        for cand in (tn, 1024, 512, 256, 128):
            if NP % cand == 0 and cand * G * 24 <= budget // 3:
                tn1 = cand
                break

    # ---- pad only the O(N) per-node vectors (never x) -----------------------
    batch_p = batch.astype(jnp.int32).reshape(-1)
    c_p = interface_count.astype(jnp.float32).reshape(-1)
    if ragged:
        batch_p = jnp.pad(batch_p, (0, NP - N), constant_values=-1)
        c_p = jnp.pad(c_p, (0, NP - N))
    batch_row = batch_p.reshape(1, NP)
    c_row = c_p.reshape(1, NP)

    cp_arb = pltpu.CompilerParams(dimension_semantics=("arbitrary",),
                                  vmem_limit_bytes=vmem_limit)

    # ---- pass 1a: per-graph online max / sum-exp -----------------------------
    m_col, l_col = pl.pallas_call(
        _segment_stats_kernel,
        out_shape=(jax.ShapeDtypeStruct((G, 1), jnp.float32),
                   jax.ShapeDtypeStruct((G, 1), jnp.float32)),
        grid=(NP // tn1,),
        in_specs=[pl.BlockSpec((1, tn1), lambda k: (0, k)),
                  pl.BlockSpec((1, tn1), lambda k: (0, k))],
        out_specs=(pl.BlockSpec((G, 1), lambda k: (0, 0)),
                   pl.BlockSpec((G, 1), lambda k: (0, 0))),
        compiler_params=cp_arb,
    )(batch_row, c_row)
    # guarded reciprocal: empty graphs (l == 0) get 0, never Inf/NaN
    linv_col = jnp.where(l_col > 0.0, 1.0 / l_col, 0.0)

    # ---- pass 1b: lane-dense per-node scores ---------------------------------
    scores_row = pl.pallas_call(
        _segment_scores_kernel,
        out_shape=jax.ShapeDtypeStruct((1, NP), jnp.float32),
        grid=(NP // tn1,),
        in_specs=[pl.BlockSpec((1, tn1), lambda k: (0, k)),
                  pl.BlockSpec((1, tn1), lambda k: (0, k)),
                  pl.BlockSpec((G, 1), lambda k: (0, 0)),
                  pl.BlockSpec((G, 1), lambda k: (0, 0))],
        out_specs=pl.BlockSpec((1, tn1), lambda k: (0, k)),
        compiler_params=cp_arb,
    )(batch_row, c_row, m_col, linv_col)

    # ---- pass 2: stream x once, accumulate the [G, F] output -----------------
    out = pl.pallas_call(
        functools.partial(_attention_pool_kernel, n_rows=N, ragged=ragged),
        out_shape=jax.ShapeDtypeStruct((G, F), x.dtype),
        grid=(f_tiles, n_tiles),
        in_specs=[
            pl.BlockSpec((n_tiles, tn), lambda j, k: (0, 0)),   # batch (resident)
            pl.BlockSpec((n_tiles, tn), lambda j, k: (0, 0)),   # scores (resident)
            pl.BlockSpec((tn, tf), lambda j, k: (k, j)),        # x (streamed once)
        ],
        out_specs=pl.BlockSpec((G, tf), lambda j, k: (0, j)),
        scratch_shapes=[pltpu.VMEM((G, tf), jnp.float32)],
        compiler_params=pltpu.CompilerParams(
            dimension_semantics=("parallel", "arbitrary"),
            vmem_limit_bytes=vmem_limit),
    )(batch_p.reshape(n_tiles, tn), scores_row.reshape(n_tiles, tn), x)
    return out


def _reference(x, c, batch, size):
    c = c.astype(jnp.float32)
    seg_max = jax.ops.segment_max(c, batch, num_segments=size)
    e = jnp.exp(c - seg_max[batch])
    den = jax.ops.segment_sum(e, batch, num_segments=size)
    scores = e / den[batch]
    xf = x.astype(jnp.float32)
    return jax.ops.segment_sum(scores[:, None] * xf + xf, batch, num_segments=size)


if __name__ == "__main__":
    key = jax.random.PRNGKey(0)
    k1, k2 = jax.random.split(key)

    N = 300     # total nodes across graphs
    F = 64      # feature dim
    G = 4       # number of graphs

    x = jax.random.normal(k1, (N, F), dtype=jnp.float32)
    interface_count = jax.random.normal(k2, (N,), dtype=jnp.float32)
    # sorted node -> graph assignment, as produced by PyG batching
    sizes = jnp.array([90, 70, 80, 60], dtype=jnp.int32)
    batch = jnp.repeat(jnp.arange(G, dtype=jnp.int32), sizes, total_repeat_length=N)

    ref = _reference(x, interface_count, batch, G)

    # multi-tile ragged path (3 node tiles, partial last tile, x never padded)
    out = global_hard_attention(x, interface_count, batch, size=G,
                                block_n=128, block_f=64)
    out = jax.block_until_ready(out)
    assert out.shape == (G, F)
    assert jnp.allclose(out, ref, atol=5e-4, rtol=5e-4), "mismatch vs reference (tiled)"

    # auto-sized path (single ragged tile, generation-aware tile/VMEM selection)
    out_auto = jax.block_until_ready(
        global_hard_attention(x, interface_count, batch, size=G))
    assert jnp.allclose(out_auto, ref, atol=5e-4, rtol=5e-4), "mismatch vs reference (auto)"

    # bf16 streaming path (halves HBM read of x; recommended default on v5e)
    out_bf16 = jax.block_until_ready(
        global_hard_attention(x.astype(jnp.bfloat16), interface_count, batch,
                              size=G, block_n=128, block_f=64))
    assert out_bf16.shape == (G, F) and out_bf16.dtype == jnp.bfloat16
    assert bool(jnp.all(jnp.isfinite(out_bf16.astype(jnp.float32))))

    print("KERNEL_OK")
</pallas_src>

<mosaic_0001>
module attributes {stable_mosaic.version = 11 : i64} {
  func.func @_segment_stats_kernel(%arg0: i32, %arg1: memref<1x128xi32, #tpu.memory_space<vmem>>, %arg2: memref<1x128xf32, #tpu.memory_space<vmem>>, %arg3: memref<4x1xf32, #tpu.memory_space<vmem>>, %arg4: memref<4x1xf32, #tpu.memory_space<vmem>>) attributes {dimension_semantics = [#tpu.dimension_semantics<arbitrary>], iteration_bounds = array<i64: 3>, scalar_prefetch = 0 : i64, scratch_operands = 0 : i64, tpu.core_type = #tpu.core_type<tc>, window_params = [{transform_indices = @transform_0, window_bounds = array<i64: 1, 128>}, {transform_indices = @transform_1, window_bounds = array<i64: 1, 128>}, {pipeline_mode = #tpu.pipeline_mode<synchronous>, transform_indices = @transform_2, window_bounds = array<i64: 4, 1>}, {pipeline_mode = #tpu.pipeline_mode<synchronous>, transform_indices = @transform_3, window_bounds = array<i64: 4, 1>}]} {
    %c0_i32 = arith.constant 0 : i32
    %0 = arith.cmpi eq, %arg0, %c0_i32 : i32
    %1 = arith.extui %0 : i1 to i32
    %c0_i32_0 = arith.constant 0 : i32
    %2 = arith.cmpi ne, %1, %c0_i32_0 : i32
    scf.if %2 {
      %cst_15 = arith.constant -1.000000e+30 : f32
      %31 = vector.broadcast %cst_15 : f32 to vector<4x1xf32>
      %c0_16 = arith.constant 0 : index
      %c0_17 = arith.constant 0 : index
      %32 = vector.load %arg3[%c0_16, %c0_17] : memref<4x1xf32, #tpu.memory_space<vmem>>, vector<4x1xf32>
      tpu.vector_store %arg3[%c0_16, %c0_17], %31 {strides = array<i32>} : memref<4x1xf32, #tpu.memory_space<vmem>>, vector<4x1xf32>,
      %cst_18 = arith.constant 0.000000e+00 : f32
      %33 = vector.broadcast %cst_18 : f32 to vector<4x1xf32>
      %c0_19 = arith.constant 0 : index
      %c0_20 = arith.constant 0 : index
      %34 = vector.load %arg4[%c0_19, %c0_20] : memref<4x1xf32, #tpu.memory_space<vmem>>, vector<4x1xf32>
      tpu.vector_store %arg4[%c0_19, %c0_20], %33 {strides = array<i32>} : memref<4x1xf32, #tpu.memory_space<vmem>>, vector<4x1xf32>,
    } else {
    }
    %c0 = arith.constant 0 : index
    %c0_1 = arith.constant 0 : index
    %3 = vector.load %arg1[%c0, %c0_1] : memref<1x128xi32, #tpu.memory_space<vmem>>, vector<1x128xi32>
    %c0_2 = arith.constant 0 : index
    %c0_3 = arith.constant 0 : index
    %4 = vector.load %arg2[%c0_2, %c0_3] : memref<1x128xf32, #tpu.memory_space<vmem>>, vector<1x128xf32>
    %5 = tpu.iota {dimensions = array<i32: 0>} : vector<4x128xi32>
    %6 = vector.broadcast %3 : vector<1x128xi32> to vector<4x128xi32>
    %7 = arith.cmpi eq, %6, %5 : vector<4x128xi32>
    %cst = arith.constant -1.000000e+30 : f32
    %8 = vector.shape_cast %4 : vector<1x128xf32> to vector<1x128xf32>
    %9 = vector.broadcast %8 : vector<1x128xf32> to vector<4x128xf32>
    %10 = vector.broadcast %cst : f32 to vector<4x128xf32>
    %11 = arith.select %7, %9, %10 : vector<4x128xi1>, vector<4x128xf32>
    %cst_4 = arith.constant dense<0xFF800000> : vector<4xf32>
    %12 = vector.multi_reduction <maximumf>, %11, %cst_4 [1] : vector<4x128xf32> to vector<4xf32>
    %13 = vector.shape_cast %12 : vector<4xf32> to vector<4x1xf32>
    %c0_5 = arith.constant 0 : index
    %c0_6 = arith.constant 0 : index
    %14 = vector.load %arg3[%c0_5, %c0_6] : memref<4x1xf32, #tpu.memory_space<vmem>>, vector<4x1xf32>
    %15 = arith.maximumf %14, %13 : vector<4x1xf32>
    %16 = vector.broadcast %4 : vector<1x128xf32> to vector<4x128xf32>
    %17 = vector.broadcast %15 : vector<4x1xf32> to vector<4x128xf32>
    %18 = arith.subf %16, %17 : vector<4x128xf32>
    %cst_7 = arith.constant -1.000000e+30 : f32
    %19 = vector.broadcast %cst_7 : f32 to vector<4x128xf32>
    %20 = arith.select %7, %18, %19 : vector<4x128xi1>, vector<4x128xf32>
    %21 = math.exp %20 : vector<4x128xf32>
    %22 = arith.subf %14, %15 : vector<4x1xf32>
    %23 = math.exp %22 : vector<4x1xf32>
    %c0_8 = arith.constant 0 : index
    %c0_9 = arith.constant 0 : index
    %24 = vector.load %arg4[%c0_8, %c0_9] : memref<4x1xf32, #tpu.memory_space<vmem>>, vector<4x1xf32>
    %25 = arith.mulf %24, %23 : vector<4x1xf32>
    %cst_10 = arith.constant dense<0.000000e+00> : vector<4xf32>
    %26 = vector.multi_reduction <add>, %21, %cst_10 [1] : vector<4x128xf32> to vector<4xf32>
    %27 = vector.shape_cast %26 : vector<4xf32> to vector<4x1xf32>
    %28 = arith.addf %25, %27 : vector<4x1xf32>
    %c0_11 = arith.constant 0 : index
    %c0_12 = arith.constant 0 : index
    %29 = vector.load %arg4[%c0_11, %c0_12] : memref<4x1xf32, #tpu.memory_space<vmem>>, vector<4x1xf32>
    tpu.vector_store %arg4[%c0_11, %c0_12], %28 {strides = array<i32>} : memref<4x1xf32, #tpu.memory_space<vmem>>, vector<4x1xf32>,
    %c0_13 = arith.constant 0 : index
    %c0_14 = arith.constant 0 : index
    %30 = vector.load %arg3[%c0_13, %c0_14] : memref<4x1xf32, #tpu.memory_space<vmem>>, vector<4x1xf32>
    tpu.vector_store %arg3[%c0_13, %c0_14], %15 {strides = array<i32>} : memref<4x1xf32, #tpu.memory_space<vmem>>, vector<4x1xf32>,
    return
  }
  func.func @transform_0(%arg0: i32) -> (i32, i32) {
    %c0_i32 = arith.constant 0 : i32
    %c0_i32_0 = arith.constant 0 : i32
    return %c0_i32, %arg0 : i32, i32
  }
  func.func @transform_1(%arg0: i32) -> (i32, i32) {
    %c0_i32 = arith.constant 0 : i32
    %c0_i32_0 = arith.constant 0 : i32
    return %c0_i32, %arg0 : i32, i32
  }
  func.func @transform_2(%arg0: i32) -> (i32, i32) {
    %c0_i32 = arith.constant 0 : i32
    %c0_i32_0 = arith.constant 0 : i32
    %c0_i32_1 = arith.constant 0 : i32
    return %c0_i32, %c0_i32_0 : i32, i32
  }
  func.func @transform_3(%arg0: i32) -> (i32, i32) {
    %c0_i32 = arith.constant 0 : i32
    %c0_i32_0 = arith.constant 0 : i32
    %c0_i32_1 = arith.constant 0 : i32
    return %c0_i32, %c0_i32_0 : i32, i32
  }
}

</mosaic_0001>

<llo_original>
// kernel: tpu_custom_call.1
$region0: #{tpu_custom_call.1}
  #allocation0 [shape = 'u32[]', space=smem, size = 0x4, offset = 0x4, fixed_abs, tag = 'smem constant byte address 0x4 - core index']
  #allocation1 [shape = 'u32[144,128]{1,0:T(1,128)}', space=vmem, size = 0x12000, scoped, tag = 'internal scratch']
  %s0 = inlined_call_operand.hbm [shape: s32[1,384], index: 0, kind: input, shape index: {}]
  %s1 = inlined_call_operand.hbm [shape: f32[1,384], index: 1, kind: input, shape index: {}]
  %s2 = inlined_call_operand.vmem [shape: f32[4,1], index: 2, kind: output, shape index: {0}]
  %s3 = inlined_call_operand.vmem [shape: f32[4,1], index: 3, kind: output, shape index: {1}]
  %4 = xla_tuple %s2, %s3
  %s5 = sld [smem:[#allocation0]]
  $region61: #{tpu_custom_call.1} parent=0
    _
  %s7 = ssub.s32 1, %s5
  %s8 = scalar_select 0, %s7, %s5
  $region1: #{tpu_custom_call.1} parent=0
    #allocation2 [shape = 'u8[1024]{0}', space=vmem, size = 0x400, scoped, tag = 'input window, operand 0']
    #allocation3 [shape = 's32[2]{0}', space=sflag, size = 0x8, scoped, tag = 'scoped memory for tpu_custom_call.1']
    #allocation4 [shape = 'u8[1024]{0}', space=vmem, size = 0x400, scoped, tag = 'input window, operand 1']
    #allocation5 [shape = 's32[2]{0}', space=sflag, size = 0x8, scoped, tag = 'scoped memory for tpu_custom_call.1']
    %9 = vsyncpa [#allocation3], 0
    %s10 = scalar_lea.sflag [#allocation3], 1
    %11 = vsyncpa %s10, 0
    %12 = vsyncpa [#allocation5], 0
    %s13 = scalar_lea.sflag [#allocation5], 1
    %14 = vsyncpa %s13, 0
    loop: start=0, step=1, limit=5
    $region2: #{tpu_custom_call.1} parent=1 // loop_pre_header
      _
    $region3: #{tpu_custom_call.1} parent=1 // loop_header
      %s16 = sphi 0, %s20
      %p17 = scmp.ge.s32.totalorder %s16, 5
      %s26 = sphi 0, %s28
      %s29 = sphi 0, %s26
      %s30 = sphi 0, %s29
      %s46 = sphi 0, %s30
      %s52 = sphi 0, %s54
      %s55 = sphi 0, %s52
      %s56 = sphi 0, %s55
      %s72 = sphi 0, %s56
      %s76 = sphi 0, %s76
      %s78 = sphi 0, %s76
      %s79 = sphi 0, %s78
      %s93 = sphi 0, %s79
      %s97 = sphi 0, %s97
      %s99 = sphi 0, %s97
      %s100 = sphi 0, %s99
      %s114 = sphi 0, %s100
    $region4: #{tpu_custom_call.1} parent=1 // loop_header_branch
      %19 = sbr.rel (%p17) target = $region8
    $region5: #{tpu_custom_call.1} parent=1 // loop_body
      %s21 = ssub.s32 %s16, 1
      %s22 = ssub.s32 %s16, 2
      %s23 = sadd.s32 %s16, 1
      %s24 = ssub.s32 %s16, %s23
      %p25 = scmp.eq.s32.totalorder %s24, 0
      %s27 = sadd.s32 %s26, 1
      %s28 = scalar_select %p25, %s26, %s27
      %p31 = pneg %p25
      %p32 = scmp.eq.s32.totalorder %s16, 2
      %p33 = por %p31, %p32
      %p34 = scmp.ne.s32.totalorder %s26, %s29
      %p35 = scmp.eq.s32.totalorder %s16, 0
      %p36 = por %p34, %p35
      %p37 = scmp.ne.s32.totalorder %s26, %s29
      %p38 = scmp.eq.s32.totalorder %s21, 2
      %p39 = por %p37, %p38
      %p40 = scmp.ne.s32.totalorder %s29, %s30
      %p41 = scmp.eq.s32.totalorder %s21, 0
      %p42 = por %p40, %p41
      %p43 = scmp.ne.s32.totalorder %s29, %s30
      %p44 = scmp.eq.s32.totalorder %s22, 2
      %p45 = por %p43, %p44
      %p47 = scmp.ne.s32.totalorder %s30, %s46
      %p48 = scmp.eq.s32.totalorder %s22, 0
      %p49 = por %p47, %p48
      %s50 = ssub.s32 %s16, %s23
      %p51 = scmp.eq.s32.totalorder %s50, 0
      %s53 = sadd.s32 %s52, 1
      %s54 = scalar_select %p51, %s52, %s53
      %p57 = pneg %p51
      %p58 = scmp.eq.s32.totalorder %s16, 2
      %p59 = por %p57, %p58
      %p60 = scmp.ne.s32.totalorder %s52, %s55
      %p61 = scmp.eq.s32.totalorder %s16, 0
      %p62 = por %p60, %p61
      %p63 = scmp.ne.s32.totalorder %s52, %s55
      %p64 = scmp.eq.s32.totalorder %s21, 2
      %p65 = por %p63, %p64
      %p66 = scmp.ne.s32.totalorder %s55, %s56
      %p67 = scmp.eq.s32.totalorder %s21, 0
      %p68 = por %p66, %p67
      %p69 = scmp.ne.s32.totalorder %s55, %s56
      %p70 = scmp.eq.s32.totalorder %s22, 2
      %p71 = por %p69, %p70
      %p73 = scmp.ne.s32.totalorder %s56, %s72
      %p74 = scmp.eq.s32.totalorder %s22, 0
      %p75 = por %p73, %p74
      %s77 = sadd.s32 %s76, 1
      %p80 = scmp.eq.s32.totalorder %s16, 2
      %p81 = scmp.ne.s32.totalorder %s76, %s78
      %p82 = scmp.eq.s32.totalorder %s16, 0
      %p83 = por %p81, %p82
      %p84 = scmp.ne.s32.totalorder %s76, %s78
      %p85 = scmp.eq.s32.totalorder %s21, 2
      %p86 = por %p84, %p85
      %p87 = scmp.ne.s32.totalorder %s78, %s79
      %p88 = scmp.eq.s32.totalorder %s21, 0
      %p89 = por %p87, %p88
      %p90 = scmp.ne.s32.totalorder %s78, %s79
      %p91 = scmp.eq.s32.totalorder %s22, 2
      %p92 = por %p90, %p91
      %p94 = scmp.ne.s32.totalorder %s79, %s93
      %p95 = scmp.eq.s32.totalorder %s22, 0
      %p96 = por %p94, %p95
      %s98 = sadd.s32 %s97, 1
      %p101 = scmp.eq.s32.totalorder %s16, 2
      %p102 = scmp.ne.s32.totalorder %s97, %s99
      %p103 = scmp.eq.s32.totalorder %s16, 0
      %p104 = por %p102, %p103
      %p105 = scmp.ne.s32.totalorder %s97, %s99
      %p106 = scmp.eq.s32.totalorder %s21, 2
      %p107 = por %p105, %p106
      %p108 = scmp.ne.s32.totalorder %s99, %s100
      %p109 = scmp.eq.s32.totalorder %s21, 0
      %p110 = por %p108, %p109
      %p111 = scmp.ne.s32.totalorder %s99, %s100
      %p112 = scmp.eq.s32.totalorder %s22, 2
      %p113 = por %p111, %p112
      %p115 = scmp.ne.s32.totalorder %s100, %s114
      %p116 = scmp.eq.s32.totalorder %s22, 0
      %p117 = por %p115, %p116
      %p118 = scmp.le.s32.totalorder 1, %s16
      %p119 = scmp.lt.s32.totalorder %s16, 4
      %p120 = pnand %p118, %p119
      %p121 = pneg %p120
      // Predicated region
      $region9: #{tpu_custom_call.1} parent=5 // pred_check
        _
      $region10: #{tpu_custom_call.1} parent=5 // pred_check_branch
        %123 = sbr.rel (%p120) target = $region12
      $region11: #{tpu_custom_call.1} parent=5 // pred_region
        %s124 = ssub.s32 %s16, 1
      $region12: #{tpu_custom_call.1} parent=5 // pred_fallthru
        _
      %p125 = scmp.lt.s32.totalorder %s16, 3
      // Predicated region
      $region13: #{tpu_custom_call.1} parent=5 // pred_check
        %p126 = pneg %p125
      $region14: #{tpu_custom_call.1} parent=5 // pred_check_branch
        %128 = sbr.rel (%p126) target = $region16
      $region15: #{tpu_custom_call.1} parent=5 // pred_region
        // Predicated region
        $region17: #{tpu_custom_call.1} parent=15 // pred_check
          %p129 = pneg %p36
        $region18: #{tpu_custom_call.1} parent=15 // pred_check_branch
          %131 = sbr.rel (%p129) target = $region20
        $region19: #{tpu_custom_call.1} parent=15 // pred_region
          %s132 = sand.u32 %s26, 1
          %s133 = scalar_lea.sflag [#allocation3], %s132
          %s134 = sand.u32 %s26, 1
          %s135 = scalar_lea.vmem [#allocation2], %s134
          %s137 = ssub.s32 16, 16
          %138 = vsyncadd %s133, %s137
          %s139 = smul.addr %s16, 16
          %s140 = scalar_lea.hbm %s0, %s139
          %s142 = sshll.u32 %s135, 4
          %s143 = int_to_ptr.vmem [resolvable:$true] %s142
          %145 = dma.hbm_to_vmem [thread:$0]  %s140, 16, %s143, %s133
        $region20: #{tpu_custom_call.1} parent=15 // pred_fallthru
          _
        // Predicated region
        $region21: #{tpu_custom_call.1} parent=15 // pred_check
          %p146 = pneg %p62
        $region22: #{tpu_custom_call.1} parent=15 // pred_check_branch
          %148 = sbr.rel (%p146) target = $region24
        $region23: #{tpu_custom_call.1} parent=15 // pred_region
          %s149 = sand.u32 %s52, 1
          %s150 = scalar_lea.sflag [#allocation5], %s149
          %s151 = sand.u32 %s52, 1
          %s152 = scalar_lea.vmem [#allocation4], %s151
          %s154 = ssub.s32 16, 16
          %155 = vsyncadd %s150, %s154
          %s156 = smul.addr %s16, 16
          %s157 = scalar_lea.hbm %s1, %s156
          %s159 = sshll.u32 %s152, 4
          %s160 = int_to_ptr.vmem [resolvable:$true] %s159
          %162 = dma.hbm_to_vmem [thread:$0]  %s157, 16, %s160, %s150
        $region24: #{tpu_custom_call.1} parent=15 // pred_fallthru
          _
      $region16: #{tpu_custom_call.1} parent=5 // pred_fallthru
        _
      %p163 = scmp.le.s32.totalorder 1, %s16
      %p164 = scmp.lt.s32.totalorder %s16, 4
      %p165 = pnand %p163, %p164
      %p166 = pneg %p165
      // Predicated region
      $region25: #{tpu_custom_call.1} parent=5 // pred_check
        _
      $region26: #{tpu_custom_call.1} parent=5 // pred_check_branch
        %168 = sbr.rel (%p165) target = $region28
      $region27: #{tpu_custom_call.1} parent=5 // pred_region
        %s169 = ssub.s32 %s16, 1
        %s170 = sand.u32 %s29, 1
        %s171 = scalar_lea.sflag [#allocation3], %s170
        %s172 = sand.u32 %s29, 1
        %s173 = scalar_lea.vmem [#allocation2], %s172
        // Predicated region
        $region29: #{tpu_custom_call.1} parent=27 // pred_check
          %p174 = pneg %p42
        $region30: #{tpu_custom_call.1} parent=27 // pred_check_branch
          %176 = sbr.rel (%p174) target = $region32
        $region31: #{tpu_custom_call.1} parent=27 // pred_region
          %177 = dma.done %s171, 16
        $region32: #{tpu_custom_call.1} parent=27 // pred_fallthru
          _
        %s178 = sand.u32 %s55, 1
        %s179 = scalar_lea.sflag [#allocation5], %s178
        %s180 = sand.u32 %s55, 1
        %s181 = scalar_lea.vmem [#allocation4], %s180
        // Predicated region
        $region33: #{tpu_custom_call.1} parent=27 // pred_check
          %p182 = pneg %p68
        $region34: #{tpu_custom_call.1} parent=27 // pred_check_branch
          %184 = sbr.rel (%p182) target = $region36
        $region35: #{tpu_custom_call.1} parent=27 // pred_region
          %185 = dma.done %s179, 16
        $region36: #{tpu_custom_call.1} parent=27 // pred_fallthru
          _
        %s186 = sand.u32 %s29, 1
        %s187 = scalar_lea.sflag [#allocation3], %s186
        %s188 = sand.u32 %s29, 1
        %s189 = scalar_lea.vmem [#allocation2], %s188
        %p190 = pneg %p42
        %p191 = pneg %p39
        %s192 = sand.u32 %s55, 1
        %s193 = scalar_lea.sflag [#allocation5], %s192
        %s194 = sand.u32 %s55, 1
        %s195 = scalar_lea.vmem [#allocation4], %s194
        %p196 = pneg %p68
        %p197 = pneg %p65
        %p198 = pneg %p89
        %p199 = pneg %p86
        %p200 = pneg %p110
        %p201 = pneg %p107
        %p202 = scmp.eq.s32.totalorder %s21, 0
        // Predicated region
        $region37: #{tpu_custom_call.1} parent=27 // pred_check
          %p203 = pneg %p202
        $region38: #{tpu_custom_call.1} parent=27 // pred_check_branch
          %205 = sbr.rel (%p203) target = $region40
        $region39: #{tpu_custom_call.1} parent=27 // pred_region
          %vm206 = vcmask 3072
          %207 = vst.msk [vmem:[%s2] sm:$0xf] %vm206, -1e+30
          %208 = vst.msk [vmem:[%s3] sm:$0xf] %vm206, 0.0
        $region40: #{tpu_custom_call.1} parent=27 // pred_fallthru
          _
        %v209 = vld [vmem:[%s173] sm:$0x1]
        %v210 = vld [vmem:[%s181] sm:$0x1]
        %v211 = vlaneseq
        %v212 = vshrl.u32 %v211, 7
        %v213 = vlaneseq
        %v214 = vshrl.u32 %v213, 7
        %v215 = vsub.s32 0, %v214
        %v216 = vrot.slane %v209, %v215
        %vm217 = vcmp.eq.s32.totalorder %v216, %v212
        %v219 = vlaneseq
        %v220 = vshrl.u32 %v219, 7
        %v221 = vsub.s32 0, %v220
        %v222 = vrot.slane %v210, %v221
        %v224 = vsel %vm217, %v222, -1e+30
        %vm225 = vcmask 1043456
        %v226 = vsel %vm225, %v224, -inf
        %227 = vmax.xlane.f32.xlu0 %v226
        %v228 = vpop.xlane.xlu0 %227
        %v229 = vld [vmem:[%s2] sm:$0xf]
        %v230 = vmax.f32 %v229, %v228
        %232 = vset.pattern.permute.xlu0 0
        %233 = vperm.xlu0 %232, %v230
        %v234 = vpop.permute.xlu0 %233
        %v236 = vsub.f32 %v222, %v234
        %v237 = vsel %vm217, %v236, -1e+30
        %v238 = vmul.f32 %v237, 1.442695
        %v239 = vpow.pop %v238
        %v240 = vsub.f32 %v229, %v230
        %v241 = vmul.f32 %v240, 1.442695
        %v242 = vpow.pop %v241
        %v243 = vld [vmem:[%s3] sm:$0xf]
        %v244 = vmul.f32 %v243, %v242
        %v245 = vsel %vm225, %v239, 0.0
        %246 = vadd.xlane.f32.xlu0 %v245
        %v247 = vpop.xlane.xlu0 %246
        %v248 = vadd.f32 %v244, %v247
        %vm249 = vcmask 3072
        %250 = vst.msk [vmem:[%s3] sm:$0xf] %vm249, %v248
        %251 = vst.msk [vmem:[%s2] sm:$0xf] %vm249, %v230
        // Predicated region
        $region41: #{tpu_custom_call.1} parent=27 // pred_check
          %p252 = pneg %p86
        $region42: #{tpu_custom_call.1} parent=27 // pred_check_branch
          %254 = sbr.rel (%p252) target = $region44
        $region43: #{tpu_custom_call.1} parent=27 // pred_region
          _
        $region44: #{tpu_custom_call.1} parent=27 // pred_fallthru
          _
        // Predicated region
        $region45: #{tpu_custom_call.1} parent=27 // pred_check
          %p255 = pneg %p107
        $region46: #{tpu_custom_call.1} parent=27 // pred_check_branch
          %257 = sbr.rel (%p255) target = $region48
        $region47: #{tpu_custom_call.1} parent=27 // pred_region
          _
        $region48: #{tpu_custom_call.1} parent=27 // pred_fallthru
          _
        // Predicated region
        $region49: #{tpu_custom_call.1} parent=27 // pred_check
          %p258 = pneg %p86
        $region50: #{tpu_custom_call.1} parent=27 // pred_check_branch
          %260 = sbr.rel (%p258) target = $region52
        $region51: #{tpu_custom_call.1} parent=27 // pred_region
          _
        $region52: #{tpu_custom_call.1} parent=27 // pred_fallthru
          _
        // Predicated region
        $region53: #{tpu_custom_call.1} parent=27 // pred_check
          %p261 = pneg %p107
        $region54: #{tpu_custom_call.1} parent=27 // pred_check_branch
          %263 = sbr.rel (%p261) target = $region56
        $region55: #{tpu_custom_call.1} parent=27 // pred_region
          _
        $region56: #{tpu_custom_call.1} parent=27 // pred_fallthru
          _
      $region28: #{tpu_custom_call.1} parent=5 // pred_fallthru
        _
      %p264 = scmp.le.s32.totalorder 2, %s16
      // Predicated region
      $region57: #{tpu_custom_call.1} parent=5 // pred_check
        %p265 = pneg %p264
      $region58: #{tpu_custom_call.1} parent=5 // pred_check_branch
        %267 = sbr.rel (%p265) target = $region60
      $region59: #{tpu_custom_call.1} parent=5 // pred_region
        %s268 = ssub.s32 %s16, 2
      $region60: #{tpu_custom_call.1} parent=5 // pred_fallthru
        _
    $region6: #{tpu_custom_call.1} parent=1 // loop_footer
      %s20 = sadd.s32 1, %s16
    $region7: #{tpu_custom_call.1} parent=1 // loop_footer_branch
      %15 = sbr.rel target = $region3
    $region8: #{tpu_custom_call.1} parent=1 // loop_exit
      _
    %269 = vsyncpa [#allocation3], 1
    %s270 = scalar_lea.sflag [#allocation3], 1
    %271 = vsyncpa %s270, 1
    %272 = vsyncpa [#allocation5], 1
    %s273 = scalar_lea.sflag [#allocation5], 1
    %274 = vsyncpa %s273, 1

</llo_original>
